<compile_context>
chip_gen: v7x
topology: tpu7x:2x2x1
jax: 0.10.0
libtpu: 0.0.40
codegen_flags: <defaults>
</compile_context>

<pallas_src>
import jax
import jax.numpy as jnp
from jax import lax
from jax.experimental import pallas as pl
from jax.experimental.pallas import tpu as pltpu


def conv_classifier_kernel(x_ref, pool_ref, w_ref, b_ref, o_ref):
    """Single grid step == whole batch.

    x_ref   : (B, Cin*H*W)      flattened NCHW input (lane-dense, 768 lanes)
    pool_ref: (Cin*H*W, Cin*9)  block-diagonal per-tap spatial-averaging weights
    w_ref   : (Cin*9, K)        fused conv-weight x linear-weight
    b_ref   : (1, K)            fused bias (b1 @ w2^T + b2)
    o_ref   : (B, K)            logits
    """
    # conv taps + global average pool, fused into one dense-contraction matmul
    feats = jnp.dot(x_ref[...], pool_ref[...],
                    preferred_element_type=jnp.float32)          # (B, Cin*9)
    # fused classifier matmul + bias (Dropout is eval-mode identity)
    logits = jnp.dot(feats, w_ref[...],
                     preferred_element_type=jnp.float32) + b_ref[...]  # (B, K)
    o_ref[...] = logits.astype(o_ref.dtype)


def conv_classifier_forward(x_nchw, w1_hwio, b1, w2_t, b2):
    """x_nchw: (B, Cin, H, W) float32 -> logits (B, K) float32."""
    B, Cin, H, W = x_nchw.shape
    Cout, K = w2_t.shape
    HW = H * W
    HIGH = lax.Precision.HIGHEST

    # ---- constant weight/shape prep (no data dependence) -----------------------
    # Tap (dy,dx) of the 3x3 "same" conv averages the unpadded pixels that fall
    # inside the shifted HxW window of the zero-padded image:
    #   rows: dy=0 -> [0, H-2], dy=1 -> all, dy=2 -> [1, H-1]   (same for cols/dx)
    r = jnp.arange(H)
    c = jnp.arange(W)
    row_ok = jnp.stack([r < H - 1, jnp.ones((H,), bool), r > 0], axis=-1)   # (H, 3)
    col_ok = jnp.stack([c < W - 1, jnp.ones((W,), bool), c > 0], axis=-1)   # (W, 3)
    tap_mask = row_ok[:, None, :, None] & col_ok[None, :, None, :]          # (H,W,3,3)
    tap_mask = tap_mask.reshape(HW, 9).astype(jnp.float32) / HW             # (HW, 9)
    # block-diagonal over input channels -> feats ordered (c, dy, dx)
    eye_c = jnp.eye(Cin, dtype=jnp.float32)
    pool_w = (eye_c[:, None, :, None] *
              tap_mask[None, :, None, :]).reshape(Cin * HW, Cin * 9)

    # Fuse conv weight with classifier weight; row order (c, dy, dx) to match feats.
    w1_cddo = jnp.transpose(w1_hwio, (2, 0, 1, 3)).reshape(Cin * 9, Cout)
    w_eff = jnp.dot(w1_cddo, w2_t, precision=HIGH)                  # (Cin*9, K)
    b_eff = (jnp.dot(b1, w2_t, precision=HIGH) + b2).reshape(1, K)  # (1, K)

    # Lane-dense input: contiguous (free) reshape of NCHW -> (B, Cin*H*W).
    x2 = x_nchw.reshape(B, Cin * HW)

    out = pl.pallas_call(
        conv_classifier_kernel,
        out_shape=jax.ShapeDtypeStruct((B, K), jnp.float32),
        grid_spec=pltpu.PrefetchScalarGridSpec(
            num_scalar_prefetch=0,
            grid=(1,),
            in_specs=[
                pl.BlockSpec((B, Cin * HW), lambda i: (0, 0)),
                pl.BlockSpec((Cin * HW, Cin * 9), lambda i: (0, 0)),
                pl.BlockSpec((Cin * 9, K), lambda i: (0, 0)),
                pl.BlockSpec((1, K), lambda i: (0, 0)),
            ],
            out_specs=pl.BlockSpec((B, K), lambda i: (0, 0)),
        ),
        compiler_params=pltpu.CompilerParams(
            dimension_semantics=("arbitrary",)),
    )(x2, pool_w, w_eff, b_eff)

    return out


def reference_forward(x_nchw, w1_hwio, b1, w2_t, b2):
    """Pure-JAX reference (XLA conv) for correctness checking."""
    x_nhwc = jnp.transpose(x_nchw, (0, 2, 3, 1))
    conv = lax.conv_general_dilated(
        x_nhwc, w1_hwio, window_strides=(1, 1), padding="SAME",
        dimension_numbers=("NHWC", "HWIO", "NHWC"),
        precision=lax.Precision.HIGHEST)
    conv = conv + b1[None, None, None, :]
    pooled = conv.mean(axis=(1, 2))                                   # (B, Cout)
    return jnp.dot(pooled, w2_t, precision=lax.Precision.HIGHEST) + b2[None, :]


if __name__ == "__main__":
    in_channels, out_channels, num_outputs = 3, 16, 3
    B, H, W = 2, 16, 16

    key = jax.random.PRNGKey(0)
    kx, kw1, kb1, kw2, kb2 = jax.random.split(key, 5)

    # Deterministic synthetic parameters (shapes from the module's __init__).
    x = jax.random.normal(kx, (B, in_channels, H, W), jnp.float32)
    w1_hwio = jax.random.normal(kw1, (3, 3, in_channels, out_channels), jnp.float32) * 0.1
    b1 = jax.random.normal(kb1, (out_channels,), jnp.float32) * 0.1
    # PyTorch Linear weight is (num_outputs, out_channels); kernel uses its transpose.
    w2 = jax.random.normal(kw2, (num_outputs, out_channels), jnp.float32) * 0.1
    b2 = jax.random.normal(kb2, (num_outputs,), jnp.float32) * 0.1
    w2_t = w2.T

    out = conv_classifier_forward(x, w1_hwio, b1, w2_t, b2)
    out = jax.block_until_ready(out)

    ref = reference_forward(x, w1_hwio, b1, w2_t, b2)
    assert out.shape == (B, num_outputs)
    assert jnp.allclose(out, ref, rtol=1e-4, atol=1e-4), (out, ref)

    print("KERNEL_OK")
</pallas_src>

<mosaic_0001>
module attributes {stable_mosaic.version = 11 : i64} {
  func.func @conv_classifier_kernel(%arg0: i32, %arg1: memref<2x768xf32, #tpu.memory_space<vmem>>, %arg2: memref<768x27xf32, #tpu.memory_space<vmem>>, %arg3: memref<27x3xf32, #tpu.memory_space<vmem>>, %arg4: memref<1x3xf32, #tpu.memory_space<vmem>>, %arg5: memref<2x3xf32, #tpu.memory_space<vmem>>) attributes {dimension_semantics = [#tpu.dimension_semantics<arbitrary>], iteration_bounds = array<i64: 1>, scalar_prefetch = 0 : i64, scratch_operands = 0 : i64, tpu.core_type = #tpu.core_type<tc>, window_params = [{pipeline_mode = #tpu.pipeline_mode<synchronous>, transform_indices = @transform_0, window_bounds = array<i64: 2, 768>}, {pipeline_mode = #tpu.pipeline_mode<synchronous>, transform_indices = @transform_1, window_bounds = array<i64: 768, 27>}, {pipeline_mode = #tpu.pipeline_mode<synchronous>, transform_indices = @transform_2, window_bounds = array<i64: 27, 3>}, {pipeline_mode = #tpu.pipeline_mode<synchronous>, transform_indices = @transform_3, window_bounds = array<i64: 1, 3>}, {pipeline_mode = #tpu.pipeline_mode<synchronous>, transform_indices = @transform_4, window_bounds = array<i64: 2, 3>}]} {
    %c0 = arith.constant 0 : index
    %c0_0 = arith.constant 0 : index
    %0 = vector.load %arg1[%c0, %c0_0] : memref<2x768xf32, #tpu.memory_space<vmem>>, vector<2x768xf32>
    %c0_1 = arith.constant 0 : index
    %c0_2 = arith.constant 0 : index
    %1 = vector.load %arg2[%c0_1, %c0_2] : memref<768x27xf32, #tpu.memory_space<vmem>>, vector<768x27xf32>
    %cst = arith.constant dense<0.000000e+00> : vector<2x27xf32>
    %2 = tpu.matmul %0, %1, %cst {dimension_numbers = #tpu.dot_dimension_numbers<[1], [0], [0], [1], [0, 0, 1, 1], [], []>} : vector<2x768xf32>, vector<768x27xf32>, vector<2x27xf32> -> vector<2x27xf32>
    %c0_3 = arith.constant 0 : index
    %c0_4 = arith.constant 0 : index
    %3 = vector.load %arg3[%c0_3, %c0_4] : memref<27x3xf32, #tpu.memory_space<vmem>>, vector<27x3xf32>
    %cst_5 = arith.constant dense<0.000000e+00> : vector<2x3xf32>
    %4 = tpu.matmul %2, %3, %cst_5 {dimension_numbers = #tpu.dot_dimension_numbers<[1], [0], [0], [1], [0, 0, 1, 1], [], []>} : vector<2x27xf32>, vector<27x3xf32>, vector<2x3xf32> -> vector<2x3xf32>
    %c0_6 = arith.constant 0 : index
    %c0_7 = arith.constant 0 : index
    %5 = vector.load %arg4[%c0_6, %c0_7] : memref<1x3xf32, #tpu.memory_space<vmem>>, vector<1x3xf32>
    %6 = vector.broadcast %5 : vector<1x3xf32> to vector<2x3xf32>
    %7 = arith.addf %4, %6 : vector<2x3xf32>
    %c0_8 = arith.constant 0 : index
    %c0_9 = arith.constant 0 : index
    %8 = vector.load %arg5[%c0_8, %c0_9] : memref<2x3xf32, #tpu.memory_space<vmem>>, vector<2x3xf32>
    tpu.vector_store %arg5[%c0_8, %c0_9], %7 {strides = array<i32>} : memref<2x3xf32, #tpu.memory_space<vmem>>, vector<2x3xf32>,
    return
  }
  func.func @transform_0(%arg0: i32) -> (i32, i32) {
    %c0_i32 = arith.constant 0 : i32
    %c0_i32_0 = arith.constant 0 : i32
    %c0_i32_1 = arith.constant 0 : i32
    return %c0_i32, %c0_i32_0 : i32, i32
  }
  func.func @transform_1(%arg0: i32) -> (i32, i32) {
    %c0_i32 = arith.constant 0 : i32
    %c0_i32_0 = arith.constant 0 : i32
    %c0_i32_1 = arith.constant 0 : i32
    return %c0_i32, %c0_i32_0 : i32, i32
  }
  func.func @transform_2(%arg0: i32) -> (i32, i32) {
    %c0_i32 = arith.constant 0 : i32
    %c0_i32_0 = arith.constant 0 : i32
    %c0_i32_1 = arith.constant 0 : i32
    return %c0_i32, %c0_i32_0 : i32, i32
  }
  func.func @transform_3(%arg0: i32) -> (i32, i32) {
    %c0_i32 = arith.constant 0 : i32
    %c0_i32_0 = arith.constant 0 : i32
    %c0_i32_1 = arith.constant 0 : i32
    return %c0_i32, %c0_i32_0 : i32, i32
  }
  func.func @transform_4(%arg0: i32) -> (i32, i32) {
    %c0_i32 = arith.constant 0 : i32
    %c0_i32_0 = arith.constant 0 : i32
    %c0_i32_1 = arith.constant 0 : i32
    return %c0_i32, %c0_i32_0 : i32, i32
  }
}

</mosaic_0001>

<llo_original>
// kernel: tpu_custom_call.1
$region0: #{tpu_custom_call.1}
  #allocation0 [shape = 'u32[]', space=smem, size = 0x4, offset = 0x4, fixed_abs, tag = 'smem constant byte address 0x4 - core index']
  #allocation1 [shape = 'u32[144,128]{1,0:T(1,128)}', space=vmem, size = 0x12000, scoped, tag = 'internal scratch']
  %s0 = inlined_call_operand.vmem [shape: f32[2,768], index: 0, kind: input, shape index: {}]
  %s1 = inlined_call_operand.vmem [shape: f32[768,27], index: 1, kind: input, shape index: {}]
  %s2 = inlined_call_operand.vmem [shape: f32[27,3], index: 2, kind: input, shape index: {}]
  %s3 = inlined_call_operand.vmem [shape: f32[1,3], index: 3, kind: input, shape index: {}]
  %s4 = inlined_call_operand.hbm [shape: f32[2,3], index: 4, kind: output, shape index: {}]
  %s5 = sld [smem:[#allocation0]]
  $region26: #{tpu_custom_call.1} parent=0
    _
  %s7 = ssub.s32 1, %s5
  %s8 = scalar_select 0, %s7, %s5
  $region1: #{tpu_custom_call.1} parent=0
    #allocation2 [shape = 'u8[1024]{0}', space=vmem, size = 0x400, scoped, tag = 'output window, operand 0, single buffered']
    #allocation3 [shape = 's32[1]{0}', space=sflag, size = 0x4, scoped, tag = 'scoped memory for tpu_custom_call.1']
    %9 = vsyncpa [#allocation3], 0
    // Predicated region
    $region2: #{tpu_custom_call.1} parent=1 // pred_check
      _
    $region3: #{tpu_custom_call.1} parent=1 // pred_check_branch
      %11 = sbr.rel (0) target = $region5
    $region4: #{tpu_custom_call.1} parent=1 // pred_region
      _
    $region5: #{tpu_custom_call.1} parent=1 // pred_fallthru
      _
    // Predicated region
    $region6: #{tpu_custom_call.1} parent=1 // pred_check
      _
    $region7: #{tpu_custom_call.1} parent=1 // pred_check_branch
      %13 = sbr.rel (0) target = $region9
    $region8: #{tpu_custom_call.1} parent=1 // pred_region
      _
    $region9: #{tpu_custom_call.1} parent=1 // pred_fallthru
      _
    // Predicated region
    $region10: #{tpu_custom_call.1} parent=1 // pred_check
      _
    $region11: #{tpu_custom_call.1} parent=1 // pred_check_branch
      %15 = sbr.rel (0) target = $region13
    $region12: #{tpu_custom_call.1} parent=1 // pred_region
      _
    $region13: #{tpu_custom_call.1} parent=1 // pred_fallthru
      _
    // Predicated region
    $region14: #{tpu_custom_call.1} parent=1 // pred_check
      _
    $region15: #{tpu_custom_call.1} parent=1 // pred_check_branch
      %17 = sbr.rel (0) target = $region17
    $region16: #{tpu_custom_call.1} parent=1 // pred_region
      _
    $region17: #{tpu_custom_call.1} parent=1 // pred_fallthru
      _
    %v18 = vld [vmem:[%s0] sm:$0xff]
    %v19 = vld [vmem:[%s0 + $0x8] sm:$0xf]
    %v20 = vld [vmem:[%s1] sm:$0xff]
    %v21 = vld [vmem:[%s1 + $0x8] sm:$0xff]
    %v22 = vld [vmem:[%s1 + $0x10] sm:$0xff]
    %v23 = vld [vmem:[%s1 + $0x18] sm:$0xff]
    %v24 = vld [vmem:[%s1 + $0x20] sm:$0xff]
    %v25 = vld [vmem:[%s1 + $0x28] sm:$0xff]
    %v26 = vld [vmem:[%s1 + $0x30] sm:$0xff]
    %v27 = vld [vmem:[%s1 + $0x38] sm:$0xff]
    %v28 = vld [vmem:[%s1 + $0x40] sm:$0xff]
    %v29 = vld [vmem:[%s1 + $0x48] sm:$0xff]
    %v30 = vld [vmem:[%s1 + $0x50] sm:$0xff]
    %v31 = vld [vmem:[%s1 + $0x58] sm:$0xff]
    %v32 = vld [vmem:[%s1 + $0x60] sm:$0xff]
    %v33 = vld [vmem:[%s1 + $0x68] sm:$0xff]
    %v34 = vld [vmem:[%s1 + $0x70] sm:$0xff]
    %v35 = vld [vmem:[%s1 + $0x78] sm:$0xff]
    %v36 = vld [vmem:[%s1 + $0x80] sm:$0xff]
    %v37 = vld [vmem:[%s1 + $0x88] sm:$0xff]
    %v38 = vld [vmem:[%s1 + $0x90] sm:$0xff]
    %v39 = vld [vmem:[%s1 + $0x98] sm:$0xff]
    %v40 = vld [vmem:[%s1 + $0xa0] sm:$0xff]
    %v41 = vld [vmem:[%s1 + $0xa8] sm:$0xff]
    %v42 = vld [vmem:[%s1 + $0xb0] sm:$0xff]
    %v43 = vld [vmem:[%s1 + $0xb8] sm:$0xff]
    %v44 = vld [vmem:[%s1 + $0xc0] sm:$0xff]
    %v45 = vld [vmem:[%s1 + $0xc8] sm:$0xff]
    %v46 = vld [vmem:[%s1 + $0xd0] sm:$0xff]
    %v47 = vld [vmem:[%s1 + $0xd8] sm:$0xff]
    %v48 = vld [vmem:[%s1 + $0xe0] sm:$0xff]
    %v49 = vld [vmem:[%s1 + $0xe8] sm:$0xff]
    %v50 = vld [vmem:[%s1 + $0xf0] sm:$0xff]
    %v51 = vld [vmem:[%s1 + $0xf8] sm:$0xff]
    %v52 = vld [vmem:[%s1 + $0x100] sm:$0xff]
    %v53 = vld [vmem:[%s1 + $0x108] sm:$0xff]
    %v54 = vld [vmem:[%s1 + $0x110] sm:$0xff]
    %v55 = vld [vmem:[%s1 + $0x118] sm:$0xff]
    %v56 = vld [vmem:[%s1 + $0x120] sm:$0xff]
    %v57 = vld [vmem:[%s1 + $0x128] sm:$0xff]
    %v58 = vld [vmem:[%s1 + $0x130] sm:$0xff]
    %v59 = vld [vmem:[%s1 + $0x138] sm:$0xff]
    %v60 = vld [vmem:[%s1 + $0x140] sm:$0xff]
    %v61 = vld [vmem:[%s1 + $0x148] sm:$0xff]
    %v62 = vld [vmem:[%s1 + $0x150] sm:$0xff]
    %v63 = vld [vmem:[%s1 + $0x158] sm:$0xff]
    %v64 = vld [vmem:[%s1 + $0x160] sm:$0xff]
    %v65 = vld [vmem:[%s1 + $0x168] sm:$0xff]
    %v66 = vld [vmem:[%s1 + $0x170] sm:$0xff]
    %v67 = vld [vmem:[%s1 + $0x178] sm:$0xff]
    %v68 = vld [vmem:[%s1 + $0x180] sm:$0xff]
    %v69 = vld [vmem:[%s1 + $0x188] sm:$0xff]
    %v70 = vld [vmem:[%s1 + $0x190] sm:$0xff]
    %v71 = vld [vmem:[%s1 + $0x198] sm:$0xff]
    %v72 = vld [vmem:[%s1 + $0x1a0] sm:$0xff]
    %v73 = vld [vmem:[%s1 + $0x1a8] sm:$0xff]
    %v74 = vld [vmem:[%s1 + $0x1b0] sm:$0xff]
    %v75 = vld [vmem:[%s1 + $0x1b8] sm:$0xff]
    %v76 = vld [vmem:[%s1 + $0x1c0] sm:$0xff]
    %v77 = vld [vmem:[%s1 + $0x1c8] sm:$0xff]
    %v78 = vld [vmem:[%s1 + $0x1d0] sm:$0xff]
    %v79 = vld [vmem:[%s1 + $0x1d8] sm:$0xff]
    %v80 = vld [vmem:[%s1 + $0x1e0] sm:$0xff]
    %v81 = vld [vmem:[%s1 + $0x1e8] sm:$0xff]
    %v82 = vld [vmem:[%s1 + $0x1f0] sm:$0xff]
    %v83 = vld [vmem:[%s1 + $0x1f8] sm:$0xff]
    %v84 = vld [vmem:[%s1 + $0x200] sm:$0xff]
    %v85 = vld [vmem:[%s1 + $0x208] sm:$0xff]
    %v86 = vld [vmem:[%s1 + $0x210] sm:$0xff]
    %v87 = vld [vmem:[%s1 + $0x218] sm:$0xff]
    %v88 = vld [vmem:[%s1 + $0x220] sm:$0xff]
    %v89 = vld [vmem:[%s1 + $0x228] sm:$0xff]
    %v90 = vld [vmem:[%s1 + $0x230] sm:$0xff]
    %v91 = vld [vmem:[%s1 + $0x238] sm:$0xff]
    %v92 = vld [vmem:[%s1 + $0x240] sm:$0xff]
    %v93 = vld [vmem:[%s1 + $0x248] sm:$0xff]
    %v94 = vld [vmem:[%s1 + $0x250] sm:$0xff]
    %v95 = vld [vmem:[%s1 + $0x258] sm:$0xff]
    %v96 = vld [vmem:[%s1 + $0x260] sm:$0xff]
    %v97 = vld [vmem:[%s1 + $0x268] sm:$0xff]
    %v98 = vld [vmem:[%s1 + $0x270] sm:$0xff]
    %v99 = vld [vmem:[%s1 + $0x278] sm:$0xff]
    %v100 = vld [vmem:[%s1 + $0x280] sm:$0xff]
    %v101 = vld [vmem:[%s1 + $0x288] sm:$0xff]
    %v102 = vld [vmem:[%s1 + $0x290] sm:$0xff]
    %v103 = vld [vmem:[%s1 + $0x298] sm:$0xff]
    %v104 = vld [vmem:[%s1 + $0x2a0] sm:$0xff]
    %v105 = vld [vmem:[%s1 + $0x2a8] sm:$0xff]
    %v106 = vld [vmem:[%s1 + $0x2b0] sm:$0xff]
    %v107 = vld [vmem:[%s1 + $0x2b8] sm:$0xff]
    %v108 = vld [vmem:[%s1 + $0x2c0] sm:$0xff]
    %v109 = vld [vmem:[%s1 + $0x2c8] sm:$0xff]
    %v110 = vld [vmem:[%s1 + $0x2d0] sm:$0xff]
    %v111 = vld [vmem:[%s1 + $0x2d8] sm:$0xff]
    %v112 = vld [vmem:[%s1 + $0x2e0] sm:$0xff]
    %v113 = vld [vmem:[%s1 + $0x2e8] sm:$0xff]
    %v114 = vld [vmem:[%s1 + $0x2f0] sm:$0xff]
    %v115 = vld [vmem:[%s1 + $0x2f8] sm:$0xff]
    %v118 = vcombine.high %v18, %v18
    %v120 = vunpack.c.l.s4 1983009808
    %v121 = vunpack.c.0.s8 %v120
    %v122 = vlaneseq
    %v123 = vshrl.u32 %v122, 7
    %v124 = vsub.s32 %v121, %v123
    %v125 = vrot.slane %v18, %v124
    %v127 = vunpack.c.l.s4 1983009808
    %v128 = vunpack.c.0.s8 %v127
    %v129 = vlaneseq
    %v130 = vshrl.u32 %v129, 7
    %v131 = vsub.s32 %v128, %v130
    %v132 = vrot.slane %v118, %v131
    %v133 = vcombine.high %v125, %v125
    %v134 = vcombine.high %v132, %v132
    %v136 = vunpack.c.l.s4 1983009808
    %v137 = vunpack.c.0.s8 %v136
    %v138 = vlaneseq
    %v139 = vshrl.u32 %v138, 7
    %v140 = vsub.s32 %v137, %v139
    %v141 = vrot.slane %v19, %v140
    %v142 = vcombine.high %v141, %v141
    %149 = vmatprep.subr.mxu0 0.0
    %150 = vmatpush1.msra.mxu0 %v20
    %151 = vmatprep.subr.mxu0 0.0
    %152 = vmatpush1.msra.mxu0 %v21
    %153 = vmatprep.subr.mxu0 0.0
    %154 = vmatpush1.msra.mxu0 %v22
    %155 = vmatprep.subr.mxu0 0.0
    %156 = vmatpush1.msra.mxu0 %v23
    %157 = vmatprep.subr.mxu0 0.0
    %158 = vmatpush1.msra.mxu0 %v24
    %159 = vmatprep.subr.mxu0 0.0
    %160 = vmatpush1.msra.mxu0 %v25
    %161 = vmatprep.subr.mxu0 0.0
    %162 = vmatpush1.msra.mxu0 %v26
    %163 = vmatprep.subr.mxu0 0.0
    %164 = vmatpush1.msra.mxu0 %v27
    %165 = vmatprep.subr.mxu0 0.0
    %166 = vmatpush1.msra.mxu0 %v28
    %167 = vmatprep.subr.mxu0 0.0
    %168 = vmatpush1.msra.mxu0 %v29
    %169 = vmatprep.subr.mxu0 0.0
    %170 = vmatpush1.msra.mxu0 %v30
    %171 = vmatprep.subr.mxu0 0.0
    %172 = vmatpush1.msra.mxu0 %v31
    %173 = vmatprep.subr.mxu0 0.0
    %174 = vmatpush1.msra.mxu0 %v32
    %175 = vmatprep.subr.mxu0 0.0
    %176 = vmatpush1.msra.mxu0 %v33
    %177 = vmatprep.subr.mxu0 0.0
    %178 = vmatpush1.msra.mxu0 %v34
    %179 = vmatprep.subr.mxu0 0.0
    %180 = vmatpush1.msra.mxu0 %v35
    %181 = vmatprep.subr.mxu0 0.0
    %182 = vmatpush1.msra.mxu0 %v36
    %183 = vmatprep.subr.mxu0 0.0
    %184 = vmatpush1.msra.mxu0 %v37
    %185 = vmatprep.subr.mxu0 0.0
    %186 = vmatpush1.msra.mxu0 %v38
    %187 = vmatprep.subr.mxu0 0.0
    %188 = vmatpush1.msra.mxu0 %v39
    %189 = vmatprep.subr.mxu0 0.0
    %190 = vmatpush1.msra.mxu0 %v40
    %191 = vmatprep.subr.mxu0 0.0
    %192 = vmatpush1.msra.mxu0 %v41
    %193 = vmatprep.subr.mxu0 0.0
    %194 = vmatpush1.msra.mxu0 %v42
    %195 = vmatprep.subr.mxu0 0.0
    %196 = vmatpush1.msra.mxu0 %v43
    %197 = vmatprep.subr.mxu0 0.0
    %198 = vmatpush1.msra.mxu0 %v44
    %199 = vmatprep.subr.mxu0 0.0
    %200 = vmatpush1.msra.mxu0 %v45
    %201 = vmatprep.subr.mxu0 0.0
    %202 = vmatpush1.msra.mxu0 %v46
    %203 = vmatprep.subr.mxu0 0.0
    %204 = vmatpush1.msra.mxu0 %v47
    %205 = vmatprep.subr.mxu0 0.0
    %206 = vmatpush1.msra.mxu0 %v48
    %207 = vmatprep.subr.mxu0 0.0
    %208 = vmatpush1.msra.mxu0 %v49
    %209 = vmatprep.subr.mxu0 0.0
    %210 = vmatpush1.msra.mxu0 %v50
    %211 = vmatprep.subr.mxu0 0.0
    %212 = vmatpush1.msra.mxu0 %v51
    %213 = vmatprep.mubr.f32.mxu0 %v133
    %214 = vmatmul.mubr.f32.gmra.mrb[0].mxu0 %v125
    %v215 = vpop.f32.mrb[0].mxu0
    %v216 = vadd.f32 0.0, %v215
    %v217 = vpop.f32.mrb[0].mxu0
    %218 = vdwg.mxu0
    %219 = vmatprep.subr.mxu0 0.0
    %220 = vmatpush1.msra.mxu0 %v52
    %221 = vmatprep.subr.mxu0 0.0
    %222 = vmatpush1.msra.mxu0 %v53
    %223 = vmatprep.subr.mxu0 0.0
    %224 = vmatpush1.msra.mxu0 %v54
    %225 = vmatprep.subr.mxu0 0.0
    %226 = vmatpush1.msra.mxu0 %v55
    %227 = vmatprep.subr.mxu0 0.0
    %228 = vmatpush1.msra.mxu0 %v56
    %229 = vmatprep.subr.mxu0 0.0
    %230 = vmatpush1.msra.mxu0 %v57
    %231 = vmatprep.subr.mxu0 0.0
    %232 = vmatpush1.msra.mxu0 %v58
    %233 = vmatprep.subr.mxu0 0.0
    %234 = vmatpush1.msra.mxu0 %v59
    %235 = vmatprep.subr.mxu0 0.0
    %236 = vmatpush1.msra.mxu0 %v60
    %237 = vmatprep.subr.mxu0 0.0
    %238 = vmatpush1.msra.mxu0 %v61
    %239 = vmatprep.subr.mxu0 0.0
    %240 = vmatpush1.msra.mxu0 %v62
    %241 = vmatprep.subr.mxu0 0.0
    %242 = vmatpush1.msra.mxu0 %v63
    %243 = vmatprep.subr.mxu0 0.0
    %244 = vmatpush1.msra.mxu0 %v64
    %245 = vmatprep.subr.mxu0 0.0
    %246 = vmatpush1.msra.mxu0 %v65
    %247 = vmatprep.subr.mxu0 0.0
    %248 = vmatpush1.msra.mxu0 %v66
    %249 = vmatprep.subr.mxu0 0.0
    %250 = vmatpush1.msra.mxu0 %v67
    %251 = vmatprep.subr.mxu0 0.0
    %252 = vmatpush1.msra.mxu0 %v68
    %253 = vmatprep.subr.mxu0 0.0
    %254 = vmatpush1.msra.mxu0 %v69
    %255 = vmatprep.subr.mxu0 0.0
    %256 = vmatpush1.msra.mxu0 %v70
    %257 = vmatprep.subr.mxu0 0.0
    %258 = vmatpush1.msra.mxu0 %v71
    %259 = vmatprep.subr.mxu0 0.0
    %260 = vmatpush1.msra.mxu0 %v72
    %261 = vmatprep.subr.mxu0 0.0
    %262 = vmatpush1.msra.mxu0 %v73
    %263 = vmatprep.subr.mxu0 0.0
    %264 = vmatpush1.msra.mxu0 %v74
    %265 = vmatprep.subr.mxu0 0.0
    %266 = vmatpush1.msra.mxu0 %v75
    %267 = vmatprep.subr.mxu0 0.0
    %268 = vmatpush1.msra.mxu0 %v76
    %269 = vmatprep.subr.mxu0 0.0
    %270 = vmatpush1.msra.mxu0 %v77
    %271 = vmatprep.subr.mxu0 0.0
    %272 = vmatpush1.msra.mxu0 %v78
    %273 = vmatprep.subr.mxu0 0.0
    %274 = vmatpush1.msra.mxu0 %v79
    %275 = vmatprep.subr.mxu0 0.0
    %276 = vmatpush1.msra.mxu0 %v80
    %277 = vmatprep.subr.mxu0 0.0
    %278 = vmatpush1.msra.mxu0 %v81
    %279 = vmatprep.subr.mxu0 0.0
    %280 = vmatpush1.msra.mxu0 %v82
    %281 = vmatprep.subr.mxu0 0.0
    %282 = vmatpush1.msra.mxu0 %v83
    %283 = vmatprep.mubr.f32.mxu0 %v134
    %284 = vmatmul.mubr.f32.gmra.mrb[0].mxu0 %v132
    %v285 = vpop.f32.mrb[0].mxu0
    %v286 = vadd.f32 %v216, %v285
    %v287 = vpop.f32.mrb[0].mxu0
    %288 = vdwg.mxu0
    %289 = vmatprep.subr.mxu0 0.0
    %290 = vmatpush1.msra.mxu0 %v84
    %291 = vmatprep.subr.mxu0 0.0
    %292 = vmatpush1.msra.mxu0 %v85
    %293 = vmatprep.subr.mxu0 0.0
    %294 = vmatpush1.msra.mxu0 %v86
    %295 = vmatprep.subr.mxu0 0.0
    %296 = vmatpush1.msra.mxu0 %v87
    %297 = vmatprep.subr.mxu0 0.0
    %298 = vmatpush1.msra.mxu0 %v88
    %299 = vmatprep.subr.mxu0 0.0
    %300 = vmatpush1.msra.mxu0 %v89
    %301 = vmatprep.subr.mxu0 0.0
    %302 = vmatpush1.msra.mxu0 %v90
    %303 = vmatprep.subr.mxu0 0.0
    %304 = vmatpush1.msra.mxu0 %v91
    %305 = vmatprep.subr.mxu0 0.0
    %306 = vmatpush1.msra.mxu0 %v92
    %307 = vmatprep.subr.mxu0 0.0
    %308 = vmatpush1.msra.mxu0 %v93
    %309 = vmatprep.subr.mxu0 0.0
    %310 = vmatpush1.msra.mxu0 %v94
    %311 = vmatprep.subr.mxu0 0.0
    %312 = vmatpush1.msra.mxu0 %v95
    %313 = vmatprep.subr.mxu0 0.0
    %314 = vmatpush1.msra.mxu0 %v96
    %315 = vmatprep.subr.mxu0 0.0
    %316 = vmatpush1.msra.mxu0 %v97
    %317 = vmatprep.subr.mxu0 0.0
    %318 = vmatpush1.msra.mxu0 %v98
    %319 = vmatprep.subr.mxu0 0.0
    %320 = vmatpush1.msra.mxu0 %v99
    %321 = vmatprep.subr.mxu0 0.0
    %322 = vmatpush1.msra.mxu0 %v100
    %323 = vmatprep.subr.mxu0 0.0
    %324 = vmatpush1.msra.mxu0 %v101
    %325 = vmatprep.subr.mxu0 0.0
    %326 = vmatpush1.msra.mxu0 %v102
    %327 = vmatprep.subr.mxu0 0.0
    %328 = vmatpush1.msra.mxu0 %v103
    %329 = vmatprep.subr.mxu0 0.0
    %330 = vmatpush1.msra.mxu0 %v104
    %331 = vmatprep.subr.mxu0 0.0
    %332 = vmatpush1.msra.mxu0 %v105
    %333 = vmatprep.subr.mxu0 0.0
    %334 = vmatpush1.msra.mxu0 %v106
    %335 = vmatprep.subr.mxu0 0.0
    %336 = vmatpush1.msra.mxu0 %v107
    %337 = vmatprep.subr.mxu0 0.0
    %338 = vmatpush1.msra.mxu0 %v108
    %339 = vmatprep.subr.mxu0 0.0
    %340 = vmatpush1.msra.mxu0 %v109
    %341 = vmatprep.subr.mxu0 0.0
    %342 = vmatpush1.msra.mxu0 %v110
    %343 = vmatprep.subr.mxu0 0.0
    %344 = vmatpush1.msra.mxu0 %v111
    %345 = vmatprep.subr.mxu0 0.0
    %346 = vmatpush1.msra.mxu0 %v112
    %347 = vmatprep.subr.mxu0 0.0
    %348 = vmatpush1.msra.mxu0 %v113
    %349 = vmatprep.subr.mxu0 0.0
    %350 = vmatpush1.msra.mxu0 %v114
    %351 = vmatprep.subr.mxu0 0.0
    %352 = vmatpush1.msra.mxu0 %v115
    %353 = vmatprep.mubr.f32.mxu0 %v142
    %354 = vmatmul.mubr.f32.gmra.mrb[0].mxu0 %v141
    %v355 = vpop.f32.mrb[0].mxu0
    %v356 = vadd.f32 %v286, %v355
    %v357 = vpop.f32.mrb[0].mxu0
    %358 = vdwg.mxu0
    %v359 = vld [vmem:[%s2] sm:$0xff]
    %v360 = vld [vmem:[%s2 + $0x8] sm:$0xff]
    %v361 = vld [vmem:[%s2 + $0x10] sm:$0xff]
    %v362 = vld [vmem:[%s2 + $0x18] sm:$0x7]
    %v363 = vld [vmem:[%s3] sm:$0x1]
    %v365 = vlaneseq
    %v366 = vshrl.u32 %v365, 7
    %v367 = vsub.s32 0, %v366
    %v368 = vrot.slane %v363, %v367
    %vm370 = vcmask 220160
    %v372 = vsel %vm370, %v356, 0
    %vm374 = vcmask 1042432
    %v376 = vsel %vm374, %v362, 0
    %378 = vmatprep.subr.mxu0 0.0
    %379 = vmatpush1.msra.mxu0 %v359
    %380 = vmatprep.subr.mxu0 0.0
    %381 = vmatpush1.msra.mxu0 %v360
    %382 = vmatprep.subr.mxu0 0.0
    %383 = vmatpush1.msra.mxu0 %v361
    %384 = vmatprep.subr.mxu0 0.0
    %385 = vmatpush1.msra.mxu0 %v376
    %386 = vmatprep.subr.mxu0 0.0
    %387 = vmatpush1.msra.mxu0 0.0
    %388 = vmatprep.subr.mxu0 0.0
    %389 = vmatpush1.msra.mxu0 0.0
    %390 = vmatprep.subr.mxu0 0.0
    %391 = vmatpush1.msra.mxu0 0.0
    %392 = vmatprep.subr.mxu0 0.0
    %393 = vmatpush1.msra.mxu0 0.0
    %394 = vmatprep.subr.mxu0 0.0
    %395 = vmatpush1.msra.mxu0 0.0
    %396 = vmatprep.subr.mxu0 0.0
    %397 = vmatpush1.msra.mxu0 0.0
    %398 = vmatprep.subr.mxu0 0.0
    %399 = vmatpush1.msra.mxu0 0.0
    %400 = vmatprep.subr.mxu0 0.0
    %401 = vmatpush1.msra.mxu0 0.0
    %402 = vmatprep.subr.mxu0 0.0
    %403 = vmatpush1.msra.mxu0 0.0
    %404 = vmatprep.subr.mxu0 0.0
    %405 = vmatpush1.msra.mxu0 0.0
    %406 = vmatprep.subr.mxu0 0.0
    %407 = vmatpush1.msra.mxu0 0.0
    %408 = vmatprep.subr.mxu0 0.0
    %409 = vmatpush1.msra.mxu0 0.0
    %410 = vmatprep.subr.mxu0 0.0
    %411 = vmatpush1.msra.mxu0 0.0
    %412 = vmatprep.subr.mxu0 0.0
    %413 = vmatpush1.msra.mxu0 0.0
    %414 = vmatprep.subr.mxu0 0.0
    %415 = vmatpush1.msra.mxu0 0.0
    %416 = vmatprep.subr.mxu0 0.0
    %417 = vmatpush1.msra.mxu0 0.0
    %418 = vmatprep.subr.mxu0 0.0
    %419 = vmatpush1.msra.mxu0 0.0
    %420 = vmatprep.subr.mxu0 0.0
    %421 = vmatpush1.msra.mxu0 0.0
    %422 = vmatprep.subr.mxu0 0.0
    %423 = vmatpush1.msra.mxu0 0.0
    %424 = vmatprep.subr.mxu0 0.0
    %425 = vmatpush1.msra.mxu0 0.0
    %426 = vmatprep.subr.mxu0 0.0
    %427 = vmatpush1.msra.mxu0 0.0
    %428 = vmatprep.subr.mxu0 0.0
    %429 = vmatpush1.msra.mxu0 0.0
    %430 = vmatprep.subr.mxu0 0.0
    %431 = vmatpush1.msra.mxu0 0.0
    %432 = vmatprep.subr.mxu0 0.0
    %433 = vmatpush1.msra.mxu0 0.0
    %434 = vmatprep.subr.mxu0 0.0
    %435 = vmatpush1.msra.mxu0 0.0
    %436 = vmatprep.subr.mxu0 0.0
    %437 = vmatpush1.msra.mxu0 0.0
    %438 = vmatprep.subr.mxu0 0.0
    %439 = vmatpush1.msra.mxu0 0.0
    %440 = vmatprep.subr.mxu0 0.0
    %441 = vmatpush1.msra.mxu0 0.0
    %442 = vmatprep.mubr.f32.mxu0 0.0
    %443 = vmatmul.mubr.f32.gmra.mrb[0].mxu0 %v372
    %v444 = vpop.f32.mrb[0].mxu0
    %v445 = vadd.f32 %v368, %v444
    %v446 = vpop.f32.mrb[0].mxu0
    %447 = vdwg.mxu0
    %vm448 = vcmask 17408
    %449 = vst.msk [vmem:[#allocation2] sm:$0x3] %vm448, %v445
    // Predicated region
    $region18: #{tpu_custom_call.1} parent=1 // pred_check
      _
    $region19: #{tpu_custom_call.1} parent=1 // pred_check_branch
      %451 = sbr.rel (0) target = $region21
    $region20: #{tpu_custom_call.1} parent=1 // pred_region
      %s453 = ssub.s32 32, 32
      %454 = vsyncadd [#allocation3], %s453
      %s456 = sshll.u32 [#allocation2], 4
      %s457 = int_to_ptr.vmem [resolvable:$true] %s456
      %459 = dma.vmem_to_hbm [thread:$0]  %s457, 32, %s4, [#allocation3]
    $region21: #{tpu_custom_call.1} parent=1 // pred_fallthru
      _
    // Predicated region
    $region22: #{tpu_custom_call.1} parent=1 // pred_check
      _
    $region23: #{tpu_custom_call.1} parent=1 // pred_check_branch
      %461 = sbr.rel (0) target = $region25
    $region24: #{tpu_custom_call.1} parent=1 // pred_region
      %462 = dma.done [#allocation3], 32
    $region25: #{tpu_custom_call.1} parent=1 // pred_fallthru
      _
    %463 = vsyncpa [#allocation3], 1

</llo_original>
